<compile_context>
chip_gen: v7x
topology: tpu7x:2x2x1
jax: 0.10.0
libtpu: 0.0.40
codegen_flags: <defaults>
</compile_context>

<pallas_src>
import functools

import jax
import jax.numpy as jnp
from jax.experimental import pallas as pl
from jax.experimental.pallas import tpu as pltpu


def _round_up(x, m):
    return ((x + m - 1) // m) * m


def _dice_sums_kernel(logits_ref, true_ref, inter_ref, card_ref, *, needs_mask):
    # grid = (w_tiles [parallel], N, h_tiles); axes 1 and 2 are the reduction.
    n = pl.program_id(1)
    h = pl.program_id(2)

    # Zero the (C, tW) accumulators at the first reduction step of each W tile.
    @pl.when(jnp.logical_and(n == 0, h == 0))
    def _():
        inter_ref[...] = jnp.zeros_like(inter_ref)
        card_ref[...] = jnp.zeros_like(card_ref)

    x = logits_ref[...].astype(jnp.float32)               # (1, C, tH, tW)

    # Softmax over the class axis (axis=1); denominator via EUP approx recip.
    m = jnp.max(x, axis=1, keepdims=True)                 # (1, 1, tH, tW)
    e = jnp.exp(x - m)                                     # (1, C, tH, tW)
    denom = jnp.sum(e, axis=1, keepdims=True)              # (1, 1, tH, tW)
    p = e * pl.reciprocal(denom, approx=True)              # (1, C, tH, tW)

    t = true_ref[...].astype(jnp.int32)                    # (1, tH, tW)
    cls = jax.lax.broadcasted_iota(jnp.int32, x.shape, 1)
    onehot = jnp.expand_dims(t, 1) == cls                  # (1, C, tH, tW) bool

    # intersection[c, w] += sum_{n,h} p[c] where t == c
    inter_ref[...] += jnp.sum(jnp.where(onehot, p, 0.0), axis=(0, 2))

    # Fused cardinality: sum(p + onehot) in ONE reduction pass
    # (saves a full (C,tH,tW)->(C,tW) reduce and the bool->f32 convert).
    card_term = jnp.where(onehot, p + 1.0, p)
    if needs_mask:
        # Padded pixels carry label -1: exclude them from the cardinality.
        card_term = jnp.where(jnp.expand_dims(t >= 0, 1), card_term, 0.0)
    card_ref[...] += jnp.sum(card_term, axis=(0, 2))


def _hw_budgets():
    """(logits block byte target, scoped vmem limit) per TPU generation."""
    try:
        kind = jax.devices()[0].device_kind.lower()
    except Exception:
        kind = ""
    if ("v5" in kind) or ("v6" in kind):
        # 128 MiB physical VMEM: deeper blocks amortize per-step overhead.
        return 4 * 1024 * 1024, 64 * 1024 * 1024
    # v7x has only 64 MiB physical VMEM (and unknown chips): stay conservative.
    return 2 * 1024 * 1024, 32 * 1024 * 1024


@functools.partial(jax.jit, static_argnames=("input_dtype",))
def dice_loss(logits, true, eps=1e-07, *, input_dtype=jnp.bfloat16):
    """logits: (N, C, H, W) float; true: (N, H, W) integer labels in [0, C).

    input_dtype controls the HBM stream dtype of the logits (the kernel
    upcasts to f32 before the softmax); bf16 is the default since the kernel
    is HBM-bound on v5e/v6e.
    """
    # TODO(synk): the module's `ignore` label path is not implemented (its
    # reference implementation is shape-inconsistent / cuda-specific).
    N, C, H, W = logits.shape
    block_target, vmem_limit = _hw_budgets()
    bytes_per = jnp.dtype(input_dtype).itemsize

    # ---- W tile (lane axis): multiple of 128; keep >= 2 W blocks whenever
    # possible so the "parallel" axis shards across v7x's two TensorCores; and
    # small enough that a >=32-row block still fits the per-block byte target.
    Wp0 = _round_up(W, 128)
    tw = 512
    while tw > 128 and (tw > Wp0
                        or (Wp0 >= 256 and tw > Wp0 // 2)
                        or C * tw * 32 * bytes_per > block_target):
        tw //= 2
    tw = min(tw, Wp0)
    Wp = _round_up(W, tw)

    # ---- H tile: size the logits block to ~block_target bytes; either a
    # single full (padded) H block, or a multiple of 32 (safe for int8/bf16
    # sublane packing).  No full-dim fallback -> no pathological huge blocks.
    th_budget = block_target // max(1, C * tw * bytes_per)
    Hp8 = _round_up(H, 8)
    if Hp8 <= max(8, th_budget):
        th = Hp8                                   # single H block
    else:
        th = max(32, (min(th_budget, 1024) // 32) * 32)
    Hp = _round_up(H, th)

    # ---- HBM stream dtypes (mem-bound on v5e/v6e): bf16 logits by default,
    # int8 labels when C fits and the H blocking respects int8 tiling.
    label_dtype = (jnp.int8 if (C <= 127 and (th % 32 == 0 or th == Hp))
                   else jnp.int32)
    logits = logits.astype(input_dtype)
    true = true.astype(label_dtype)

    needs_mask = (Hp != H) or (Wp != W)
    if needs_mask:
        logits = jnp.pad(logits, ((0, 0), (0, 0), (0, Hp - H), (0, Wp - W)))
        true = jnp.pad(true, ((0, 0), (0, Hp - H), (0, Wp - W)),
                       constant_values=-1)

    grid = (Wp // tw, N, Hp // th)
    kernel = functools.partial(_dice_sums_kernel, needs_mask=needs_mask)

    inter, card = pl.pallas_call(
        kernel,
        out_shape=(
            jax.ShapeDtypeStruct((C, Wp), jnp.float32),
            jax.ShapeDtypeStruct((C, Wp), jnp.float32),
        ),
        grid_spec=pltpu.PrefetchScalarGridSpec(
            num_scalar_prefetch=0,
            grid=grid,
            in_specs=[
                pl.BlockSpec((1, C, th, tw), lambda w, n, h: (n, 0, h, w)),
                pl.BlockSpec((1, th, tw), lambda w, n, h: (n, h, w)),
            ],
            out_specs=[
                pl.BlockSpec((C, tw), lambda w, n, h: (0, w)),
                pl.BlockSpec((C, tw), lambda w, n, h: (0, w)),
            ],
        ),
        compiler_params=pltpu.CompilerParams(
            # Disjoint (C, tw) output blocks along W -> shardable across TCs;
            # N and H tiles are the reduction -> trailing "arbitrary".
            dimension_semantics=("parallel", "arbitrary", "arbitrary"),
            vmem_limit_bytes=vmem_limit,
        ),
    )(logits, true)

    inter = inter[:, :W]
    card = card[:, :W]
    dice = jnp.mean(2.0 * inter / (card + eps))
    return 1.0 - dice


def _dice_loss_ref(logits, true, eps=1e-07):
    # pure-JAX reference mirroring the PyTorch forward exactly.
    C = logits.shape[1]
    p = jax.nn.softmax(logits.astype(jnp.float32), axis=1)
    oh = jnp.transpose(
        jax.nn.one_hot(true.astype(jnp.int32), C, dtype=jnp.float32),
        (0, 3, 1, 2))                                      # (N, C, H, W)
    dims = (0, 2)                                          # from true.ndim == 3
    inter = jnp.sum(p * oh, axis=dims)
    card = jnp.sum(p + oh, axis=dims)
    return 1.0 - jnp.mean(2.0 * inter / (card + eps))


if __name__ == "__main__":
    key = jax.random.PRNGKey(0)
    k1, k2 = jax.random.split(key)
    N, C, H, W = 2, 4, 16, 16
    logits = jax.random.normal(k1, (N, C, H, W), dtype=jnp.float32)
    true = jax.random.randint(k2, (N, H, W), 0, C, dtype=jnp.int32)

    ref = jax.block_until_ready(_dice_loss_ref(logits, true))

    # Full-precision input stream: tight check against the f32 reference
    # (approx reciprocal in the softmax denominator => small slack).
    out_f32 = jax.block_until_ready(
        dice_loss(logits, true, input_dtype=jnp.float32))
    assert jnp.allclose(out_f32, ref, atol=2e-3, rtol=2e-3), (out_f32, ref)

    # Default bf16 logits stream (halves the dominant HBM read on v5e/v6e).
    out_bf16 = jax.block_until_ready(
        dice_loss(logits, true, input_dtype=jnp.bfloat16))
    assert jnp.allclose(out_bf16, ref, atol=1e-2, rtol=1e-2), (out_bf16, ref)

    print("KERNEL_OK")
</pallas_src>

<mosaic_0001>
module attributes {stable_mosaic.version = 11 : i64} {
  func.func @_dice_sums_kernel(%arg0: i32, %arg1: i32, %arg2: i32, %arg3: memref<1x4x16x128xf32, #tpu.memory_space<vmem>>, %arg4: memref<1x16x128xi8, #tpu.memory_space<vmem>>, %arg5: memref<4x128xf32, #tpu.memory_space<vmem>>, %arg6: memref<4x128xf32, #tpu.memory_space<vmem>>) attributes {dimension_semantics = [#tpu.dimension_semantics<parallel>, #tpu.dimension_semantics<arbitrary>, #tpu.dimension_semantics<arbitrary>], iteration_bounds = array<i64: 1, 2, 1>, scalar_prefetch = 0 : i64, scratch_operands = 0 : i64, tpu.core_type = #tpu.core_type<tc>, window_params = [{transform_indices = @transform_0, window_bounds = array<i64: 1, 4, 16, 128>}, {transform_indices = @transform_1, window_bounds = array<i64: 1, 16, 128>}, {transform_indices = @transform_2, window_bounds = array<i64: 4, 128>}, {transform_indices = @transform_3, window_bounds = array<i64: 4, 128>}]} {
    %c0_i32 = arith.constant 0 : i32
    %0 = arith.cmpi eq, %arg1, %c0_i32 : i32
    %c0_i32_0 = arith.constant 0 : i32
    %1 = arith.cmpi eq, %arg2, %c0_i32_0 : i32
    %2 = arith.andi %0, %1 : i1
    %3 = arith.extui %2 : i1 to i32
    %c0_i32_1 = arith.constant 0 : i32
    %4 = arith.cmpi ne, %3, %c0_i32_1 : i32
    scf.if %4 {
      %cst_23 = arith.constant 0.000000e+00 : f32
      %42 = vector.broadcast %cst_23 : f32 to vector<4x128xf32>
      %c0_24 = arith.constant 0 : index
      %c0_25 = arith.constant 0 : index
      %43 = vector.load %arg5[%c0_24, %c0_25] : memref<4x128xf32, #tpu.memory_space<vmem>>, vector<4x128xf32>
      tpu.vector_store %arg5[%c0_24, %c0_25], %42 {strides = array<i32>} : memref<4x128xf32, #tpu.memory_space<vmem>>, vector<4x128xf32>,
      %cst_26 = arith.constant 0.000000e+00 : f32
      %44 = vector.broadcast %cst_26 : f32 to vector<4x128xf32>
      %c0_27 = arith.constant 0 : index
      %c0_28 = arith.constant 0 : index
      %45 = vector.load %arg6[%c0_27, %c0_28] : memref<4x128xf32, #tpu.memory_space<vmem>>, vector<4x128xf32>
      tpu.vector_store %arg6[%c0_27, %c0_28], %44 {strides = array<i32>} : memref<4x128xf32, #tpu.memory_space<vmem>>, vector<4x128xf32>,
    } else {
    }
    %c0 = arith.constant 0 : index
    %c0_2 = arith.constant 0 : index
    %c0_3 = arith.constant 0 : index
    %c0_4 = arith.constant 0 : index
    %5 = vector.load %arg3[%c0, %c0_2, %c0_3, %c0_4] : memref<1x4x16x128xf32, #tpu.memory_space<vmem>>, vector<1x4x16x128xf32>
    %cst = arith.constant dense<0xFF800000> : vector<1x16x128xf32>
    %6 = vector.multi_reduction <maximumf>, %5, %cst [1] : vector<1x4x16x128xf32> to vector<1x16x128xf32>
    %7 = vector.shape_cast %6 : vector<1x16x128xf32> to vector<1x1x16x128xf32>
    %8 = vector.broadcast %7 : vector<1x1x16x128xf32> to vector<1x4x16x128xf32>
    %9 = arith.subf %5, %8 : vector<1x4x16x128xf32>
    %10 = math.exp %9 : vector<1x4x16x128xf32>
    %cst_5 = arith.constant dense<0.000000e+00> : vector<1x16x128xf32>
    %11 = vector.multi_reduction <add>, %10, %cst_5 [1] : vector<1x4x16x128xf32> to vector<1x16x128xf32>
    %12 = vector.shape_cast %11 : vector<1x16x128xf32> to vector<1x1x16x128xf32>
    %13 = tpu.reciprocal %12 {approx = true} : vector<1x1x16x128xf32> -> vector<1x1x16x128xf32>
    %14 = vector.broadcast %13 : vector<1x1x16x128xf32> to vector<1x4x16x128xf32>
    %15 = arith.mulf %10, %14 : vector<1x4x16x128xf32>
    %c0_6 = arith.constant 0 : index
    %c0_7 = arith.constant 0 : index
    %c0_8 = arith.constant 0 : index
    %16 = vector.load %arg4[%c0_6, %c0_7, %c0_8] : memref<1x16x128xi8, #tpu.memory_space<vmem>>, vector<1x16x128xi8>
    %17 = arith.extsi %16 : vector<1x16x128xi8> to vector<1x16x128xi32>
    %18 = tpu.iota {dimensions = array<i32: 1>} : vector<1x4x16x128xi32>
    %19 = vector.shape_cast %17 : vector<1x16x128xi32> to vector<1x1x16x128xi32>
    %20 = vector.broadcast %19 : vector<1x1x16x128xi32> to vector<1x4x16x128xi32>
    %21 = arith.cmpi eq, %20, %18 : vector<1x4x16x128xi32>
    %c0_9 = arith.constant 0 : index
    %c0_10 = arith.constant 0 : index
    %22 = vector.load %arg5[%c0_9, %c0_10] : memref<4x128xf32, #tpu.memory_space<vmem>>, vector<4x128xf32>
    %cst_11 = arith.constant 0.000000e+00 : f32
    %23 = vector.broadcast %cst_11 : f32 to vector<1x4x16x128xf32>
    %24 = arith.select %21, %15, %23 : vector<1x4x16x128xi1>, vector<1x4x16x128xf32>
    %cst_12 = arith.constant dense<0.000000e+00> : vector<4x128xf32>
    %25 = vector.multi_reduction <add>, %24, %cst_12 [0, 2] : vector<1x4x16x128xf32> to vector<4x128xf32>
    %26 = arith.addf %22, %25 : vector<4x128xf32>
    %c0_13 = arith.constant 0 : index
    %c0_14 = arith.constant 0 : index
    %27 = vector.load %arg5[%c0_13, %c0_14] : memref<4x128xf32, #tpu.memory_space<vmem>>, vector<4x128xf32>
    tpu.vector_store %arg5[%c0_13, %c0_14], %26 {strides = array<i32>} : memref<4x128xf32, #tpu.memory_space<vmem>>, vector<4x128xf32>,
    %cst_15 = arith.constant 1.000000e+00 : f32
    %28 = vector.broadcast %cst_15 : f32 to vector<1x4x16x128xf32>
    %29 = arith.addf %15, %28 : vector<1x4x16x128xf32>
    %30 = arith.select %21, %29, %15 : vector<1x4x16x128xi1>, vector<1x4x16x128xf32>
    %c0_i32_16 = arith.constant 0 : i32
    %31 = vector.broadcast %c0_i32_16 : i32 to vector<1x16x128xi32>
    %32 = arith.cmpi sge, %17, %31 : vector<1x16x128xi32>
    %33 = vector.shape_cast %32 : vector<1x16x128xi1> to vector<1x1x16x128xi1>
    %cst_17 = arith.constant 0.000000e+00 : f32
    %34 = vector.shape_cast %33 : vector<1x1x16x128xi1> to vector<1x1x16x128xi1>
    %35 = vector.broadcast %34 : vector<1x1x16x128xi1> to vector<1x4x16x128xi1>
    %36 = vector.broadcast %cst_17 : f32 to vector<1x4x16x128xf32>
    %37 = arith.select %35, %30, %36 : vector<1x4x16x128xi1>, vector<1x4x16x128xf32>
    %c0_18 = arith.constant 0 : index
    %c0_19 = arith.constant 0 : index
    %38 = vector.load %arg6[%c0_18, %c0_19] : memref<4x128xf32, #tpu.memory_space<vmem>>, vector<4x128xf32>
    %cst_20 = arith.constant dense<0.000000e+00> : vector<4x128xf32>
    %39 = vector.multi_reduction <add>, %37, %cst_20 [0, 2] : vector<1x4x16x128xf32> to vector<4x128xf32>
    %40 = arith.addf %38, %39 : vector<4x128xf32>
    %c0_21 = arith.constant 0 : index
    %c0_22 = arith.constant 0 : index
    %41 = vector.load %arg6[%c0_21, %c0_22] : memref<4x128xf32, #tpu.memory_space<vmem>>, vector<4x128xf32>
    tpu.vector_store %arg6[%c0_21, %c0_22], %40 {strides = array<i32>} : memref<4x128xf32, #tpu.memory_space<vmem>>, vector<4x128xf32>,
    return
  }
  func.func @transform_0(%arg0: i32, %arg1: i32, %arg2: i32) -> (i32, i32, i32, i32) {
    %c0_i32 = arith.constant 0 : i32
    %c0_i32_0 = arith.constant 0 : i32
    return %arg1, %c0_i32, %arg2, %arg0 : i32, i32, i32, i32
  }
  func.func @transform_1(%arg0: i32, %arg1: i32, %arg2: i32) -> (i32, i32, i32) {
    %c0_i32 = arith.constant 0 : i32
    return %arg1, %arg2, %arg0 : i32, i32, i32
  }
  func.func @transform_2(%arg0: i32, %arg1: i32, %arg2: i32) -> (i32, i32) {
    %c0_i32 = arith.constant 0 : i32
    %c0_i32_0 = arith.constant 0 : i32
    return %c0_i32, %arg0 : i32, i32
  }
  func.func @transform_3(%arg0: i32, %arg1: i32, %arg2: i32) -> (i32, i32) {
    %c0_i32 = arith.constant 0 : i32
    %c0_i32_0 = arith.constant 0 : i32
    return %c0_i32, %arg0 : i32, i32
  }
}

</mosaic_0001>

<llo_original>
// kernel: dice_loss.1
$region0: #{dice_loss.1}
  #allocation0 [shape = 'u32[]', space=smem, size = 0x4, offset = 0x4, fixed_abs, tag = 'smem constant byte address 0x4 - core index']
  #allocation1 [shape = 'u32[144,128]{1,0:T(1,128)}', space=vmem, size = 0x12000, scoped, tag = 'internal scratch']
  %s0 = inlined_call_operand.vmem [shape: f32[2,4,16,128], index: 0, kind: input, shape index: {}]
  %s1 = inlined_call_operand.vmem [shape: s8[2,16,128], index: 1, kind: input, shape index: {}]
  %s2 = inlined_call_operand.vmem [shape: f32[4,128], index: 2, kind: output, shape index: {0}]
  %s3 = inlined_call_operand.vmem [shape: f32[4,128], index: 3, kind: output, shape index: {1}]
  %4 = xla_tuple %s2, %s3
  %s5 = sld [smem:[#allocation0]]
  $region53: #{dice_loss.1} parent=0
    _
  %s7 = ssub.s32 1, %s5
  %s8 = scalar_select 0, %s7, %s5
  loop: start=0, step=1, limit=4
  $region2: #{dice_loss.1} parent=0 // loop_pre_header
    _
  $region3: #{dice_loss.1} parent=0 // loop_header
    %s10 = sphi 0, %s14
    %p11 = scmp.ge.s32.totalorder %s10, 4
    %s17 = sphi 0, %s36
    %s18 = sphi 0, %s32
    %s19 = sphi 0, %s28
    %s20 = sphi 0, %s17
    %s21 = sphi 0, %s18
    %s22 = sphi 0, %s19
    %s23 = sphi 0, %s20
    %s24 = sphi 0, %s21
    %s25 = sphi 0, %s22
    %s43 = sphi 0, %s45
    %s46 = sphi 0, %s43
    %s47 = sphi 0, %s46
    %s63 = sphi 0, %s47
    %s73 = sphi 0, %s75
    %s76 = sphi 0, %s73
    %s77 = sphi 0, %s76
    %s93 = sphi 0, %s77
    %s99 = sphi 0, %s101
    %s102 = sphi 0, %s99
    %s103 = sphi 0, %s102
    %s119 = sphi 0, %s103
    %s125 = sphi 0, %s127
    %s128 = sphi 0, %s125
    %s129 = sphi 0, %s128
    %s145 = sphi 0, %s129
  $region4: #{dice_loss.1} parent=0 // loop_header_branch
    %13 = sbr.rel (%p11) target = $region8
  $region5: #{dice_loss.1} parent=0 // loop_body
    %s15 = ssub.s32 %s10, 1
    %s16 = ssub.s32 %s10, 2
    %s26 = sadd.s32 1, %s19
    %p27 = scmp.ge.s32.totalorder %s26, 1
    %s28 = scalar_select %p27, 0, %s26
    %s29 = sadd.s32 1, %s18
    %s30 = scalar_select %p27, %s29, %s18
    %p31 = scmp.ge.s32.totalorder %s30, 2
    %s32 = scalar_select %p31, 0, %s30
    %s33 = sadd.s32 1, %s17
    %s34 = scalar_select %p31, %s33, %s17
    %p35 = scmp.ge.s32.totalorder %s34, 1
    %s36 = scalar_select %p35, 0, %s34
    %s37 = ssub.s32 %s18, %s32
    %s38 = ssub.s32 %s19, %s28
    %s39 = sor.u32 %s37, %s38
    %s40 = ssub.s32 %s17, %s36
    %s41 = sor.u32 %s39, %s40
    %p42 = scmp.eq.s32.totalorder %s41, 0
    %s44 = sadd.s32 %s43, 1
    %s45 = scalar_select %p42, %s43, %s44
    %p48 = pneg %p42
    %p49 = scmp.eq.s32.totalorder %s10, 1
    %p50 = por %p48, %p49
    %p51 = scmp.ne.s32.totalorder %s43, %s46
    %p52 = scmp.eq.s32.totalorder %s10, 0
    %p53 = por %p51, %p52
    %p54 = scmp.ne.s32.totalorder %s43, %s46
    %p55 = scmp.eq.s32.totalorder %s15, 1
    %p56 = por %p54, %p55
    %p57 = scmp.ne.s32.totalorder %s46, %s47
    %p58 = scmp.eq.s32.totalorder %s15, 0
    %p59 = por %p57, %p58
    %p60 = scmp.ne.s32.totalorder %s46, %s47
    %p61 = scmp.eq.s32.totalorder %s16, 1
    %p62 = por %p60, %p61
    %p64 = scmp.ne.s32.totalorder %s47, %s63
    %p65 = scmp.eq.s32.totalorder %s16, 0
    %p66 = por %p64, %p65
    %s67 = ssub.s32 %s18, %s32
    %s68 = ssub.s32 %s19, %s28
    %s69 = sor.u32 %s67, %s68
    %s70 = ssub.s32 %s17, %s36
    %s71 = sor.u32 %s69, %s70
    %p72 = scmp.eq.s32.totalorder %s71, 0
    %s74 = sadd.s32 %s73, 1
    %s75 = scalar_select %p72, %s73, %s74
    %p78 = pneg %p72
    %p79 = scmp.eq.s32.totalorder %s10, 1
    %p80 = por %p78, %p79
    %p81 = scmp.ne.s32.totalorder %s73, %s76
    %p82 = scmp.eq.s32.totalorder %s10, 0
    %p83 = por %p81, %p82
    %p84 = scmp.ne.s32.totalorder %s73, %s76
    %p85 = scmp.eq.s32.totalorder %s15, 1
    %p86 = por %p84, %p85
    %p87 = scmp.ne.s32.totalorder %s76, %s77
    %p88 = scmp.eq.s32.totalorder %s15, 0
    %p89 = por %p87, %p88
    %p90 = scmp.ne.s32.totalorder %s76, %s77
    %p91 = scmp.eq.s32.totalorder %s16, 1
    %p92 = por %p90, %p91
    %p94 = scmp.ne.s32.totalorder %s77, %s93
    %p95 = scmp.eq.s32.totalorder %s16, 0
    %p96 = por %p94, %p95
    %s97 = ssub.s32 %s17, %s36
    %p98 = scmp.eq.s32.totalorder %s97, 0
    %s100 = sadd.s32 %s99, 1
    %s101 = scalar_select %p98, %s99, %s100
    %p104 = pneg %p98
    %p105 = scmp.eq.s32.totalorder %s10, 1
    %p106 = por %p104, %p105
    %p107 = scmp.ne.s32.totalorder %s99, %s102
    %p108 = scmp.eq.s32.totalorder %s10, 0
    %p109 = por %p107, %p108
    %p110 = scmp.ne.s32.totalorder %s99, %s102
    %p111 = scmp.eq.s32.totalorder %s15, 1
    %p112 = por %p110, %p111
    %p113 = scmp.ne.s32.totalorder %s102, %s103
    %p114 = scmp.eq.s32.totalorder %s15, 0
    %p115 = por %p113, %p114
    %p116 = scmp.ne.s32.totalorder %s102, %s103
    %p117 = scmp.eq.s32.totalorder %s16, 1
    %p118 = por %p116, %p117
    %p120 = scmp.ne.s32.totalorder %s103, %s119
    %p121 = scmp.eq.s32.totalorder %s16, 0
    %p122 = por %p120, %p121
    %s123 = ssub.s32 %s17, %s36
    %p124 = scmp.eq.s32.totalorder %s123, 0
    %s126 = sadd.s32 %s125, 1
    %s127 = scalar_select %p124, %s125, %s126
    %p130 = pneg %p124
    %p131 = scmp.eq.s32.totalorder %s10, 1
    %p132 = por %p130, %p131
    %p133 = scmp.ne.s32.totalorder %s125, %s128
    %p134 = scmp.eq.s32.totalorder %s10, 0
    %p135 = por %p133, %p134
    %p136 = scmp.ne.s32.totalorder %s125, %s128
    %p137 = scmp.eq.s32.totalorder %s15, 1
    %p138 = por %p136, %p137
    %p139 = scmp.ne.s32.totalorder %s128, %s129
    %p140 = scmp.eq.s32.totalorder %s15, 0
    %p141 = por %p139, %p140
    %p142 = scmp.ne.s32.totalorder %s128, %s129
    %p143 = scmp.eq.s32.totalorder %s16, 1
    %p144 = por %p142, %p143
    %p146 = scmp.ne.s32.totalorder %s129, %s145
    %p147 = scmp.eq.s32.totalorder %s16, 0
    %p148 = por %p146, %p147
    %p149 = scmp.le.s32.totalorder 1, %s10
    %p150 = scmp.lt.s32.totalorder %s10, 3
    %p151 = pnand %p149, %p150
    %p152 = pneg %p151
    // Predicated region
    $region9: #{dice_loss.1} parent=5 // pred_check
      _
    $region10: #{dice_loss.1} parent=5 // pred_check_branch
      %154 = sbr.rel (%p151) target = $region12
    $region11: #{dice_loss.1} parent=5 // pred_region
      %s155 = ssub.s32 %s10, 1
    $region12: #{dice_loss.1} parent=5 // pred_fallthru
      _
    %p156 = scmp.lt.s32.totalorder %s10, 2
    // Predicated region
    $region13: #{dice_loss.1} parent=5 // pred_check
      %p157 = pneg %p156
    $region14: #{dice_loss.1} parent=5 // pred_check_branch
      %159 = sbr.rel (%p157) target = $region16
    $region15: #{dice_loss.1} parent=5 // pred_region
      // Predicated region
      $region17: #{dice_loss.1} parent=15 // pred_check
        %p160 = pneg %p53
      $region18: #{dice_loss.1} parent=15 // pred_check_branch
        %162 = sbr.rel (%p160) target = $region20
      $region19: #{dice_loss.1} parent=15 // pred_region
        %s163 = smul.u32 2, %s19
        %p164 = scmp.lt.s32.totalorder %s18, 1
        %s165 = scalar_select %p164, %s18, 1
        %p166 = scmp.lt.s32.totalorder %s163, 1
        %s167 = scalar_select %p166, %s163, 1
        %p168 = scmp.lt.s32.totalorder %s17, 0
        %s169 = scalar_select %p168, %s17, 0
        %s170 = sadd.s32 %s169, %s167
        %s171 = smul.addr %s165, 8
        %s172 = sadd.s32 %s170, %s171
        %s173 = smul.addr %s172, 8
        %s174 = scalar_lea.vmem %s0, %s173
        %s175 = smul.u32 2, %s19
      $region20: #{dice_loss.1} parent=15 // pred_fallthru
        _
      // Predicated region
      $region21: #{dice_loss.1} parent=15 // pred_check
        %p176 = pneg %p83
      $region22: #{dice_loss.1} parent=15 // pred_check_branch
        %178 = sbr.rel (%p176) target = $region24
      $region23: #{dice_loss.1} parent=15 // pred_region
        %s179 = smul.u32 2, %s19
        %p180 = scmp.lt.s32.totalorder %s18, 1
        %s181 = scalar_select %p180, %s18, 1
        %p182 = scmp.lt.s32.totalorder %s179, 1
        %s183 = scalar_select %p182, %s179, 1
        %p184 = scmp.lt.s32.totalorder %s17, 0
        %s185 = scalar_select %p184, %s17, 0
        %s186 = sadd.s32 %s185, %s183
        %s187 = smul.addr %s181, 2
        %s188 = sadd.s32 %s186, %s187
        %s189 = smul.addr %s188, 2
        %s190 = scalar_lea.vmem %s1, %s189
        %s191 = smul.u32 2, %s19
      $region24: #{dice_loss.1} parent=15 // pred_fallthru
        _
    $region16: #{dice_loss.1} parent=5 // pred_fallthru
      _
    %p192 = scmp.le.s32.totalorder 1, %s10
    %p193 = scmp.lt.s32.totalorder %s10, 3
    %p194 = pnand %p192, %p193
    %p195 = pneg %p194
    // Predicated region
    $region25: #{dice_loss.1} parent=5 // pred_check
      _
    $region26: #{dice_loss.1} parent=5 // pred_check_branch
      %197 = sbr.rel (%p194) target = $region28
    $region27: #{dice_loss.1} parent=5 // pred_region
      %s198 = ssub.s32 %s10, 1
      %s199 = smul.u32 2, %s22
      %p200 = scmp.lt.s32.totalorder %s21, 1
      %s201 = scalar_select %p200, %s21, 1
      %p202 = scmp.lt.s32.totalorder %s199, 1
      %s203 = scalar_select %p202, %s199, 1
      %p204 = scmp.lt.s32.totalorder %s20, 0
      %s205 = scalar_select %p204, %s20, 0
      %s206 = sadd.s32 %s205, %s203
      %s207 = smul.addr %s201, 8
      %s208 = sadd.s32 %s206, %s207
      %s209 = smul.addr %s208, 8
      %s210 = scalar_lea.vmem %s0, %s209
      %p211 = pneg %p59
      %p212 = pneg %p56
      %s213 = smul.u32 2, %s22
      %p214 = scmp.lt.s32.totalorder %s21, 1
      %s215 = scalar_select %p214, %s21, 1
      %p216 = scmp.lt.s32.totalorder %s213, 1
      %s217 = scalar_select %p216, %s213, 1
      %p218 = scmp.lt.s32.totalorder %s20, 0
      %s219 = scalar_select %p218, %s20, 0
      %s220 = sadd.s32 %s219, %s217
      %s221 = smul.addr %s215, 2
      %s222 = sadd.s32 %s220, %s221
      %s223 = smul.addr %s222, 2
      %s224 = scalar_lea.vmem %s1, %s223
      %p225 = pneg %p89
      %p226 = pneg %p86
      %p227 = pneg %p115
      %p228 = pneg %p112
      %p229 = scmp.lt.s32.totalorder %s20, 0
      %s230 = scalar_select %p229, %s20, 0
      %s231 = smul.addr %s230, 4
      %s232 = scalar_lea.vmem %s2, %s231
      %p233 = pneg %p141
      %p234 = pneg %p138
      %p235 = scmp.lt.s32.totalorder %s20, 0
      %s236 = scalar_select %p235, %s20, 0
      %s237 = smul.addr %s236, 4
      %s238 = scalar_lea.vmem %s3, %s237
      %s239 = smul.u32 2, %s22
      %p240 = scmp.lt.s32.totalorder %s21, 1
      %s241 = scalar_select %p240, %s21, 1
      %p242 = scmp.lt.s32.totalorder %s239, 1
      %s243 = scalar_select %p242, %s239, 1
      %p244 = scmp.lt.s32.totalorder %s20, 0
      %s245 = scalar_select %p244, %s20, 0
      %s246 = sadd.s32 %s245, %s243
      %s247 = smul.addr %s241, 8
      %s248 = sadd.s32 %s246, %s247
      %s249 = smul.addr %s248, 8
      %s250 = scalar_lea.vmem %s0, %s249
      %s251 = smul.u32 2, %s22
      %s252 = smul.u32 2, %s22
      %p253 = scmp.lt.s32.totalorder %s21, 1
      %s254 = scalar_select %p253, %s21, 1
      %p255 = scmp.lt.s32.totalorder %s252, 1
      %s256 = scalar_select %p255, %s252, 1
      %p257 = scmp.lt.s32.totalorder %s20, 0
      %s258 = scalar_select %p257, %s20, 0
      %s259 = sadd.s32 %s258, %s256
      %s260 = smul.addr %s254, 2
      %s261 = sadd.s32 %s259, %s260
      %s262 = smul.addr %s261, 2
      %s263 = scalar_lea.vmem %s1, %s262
      %s264 = smul.u32 2, %s22
      %p265 = scmp.lt.s32.totalorder %s20, 0
      %s266 = scalar_select %p265, %s20, 0
      %s267 = smul.addr %s266, 4
      %s268 = scalar_lea.vmem %s2, %s267
      %p269 = scmp.lt.s32.totalorder %s20, 0
      %s270 = scalar_select %p269, %s20, 0
      %s271 = smul.addr %s270, 4
      %s272 = scalar_lea.vmem %s3, %s271
      %p273 = scmp.eq.s32.totalorder %s21, 0
      %p274 = scmp.eq.s32.totalorder %s22, 0
      %p275 = pnand %p273, %p274
      %p276 = pneg %p275
      // Predicated region
      $region29: #{dice_loss.1} parent=27 // pred_check
        _
      $region30: #{dice_loss.1} parent=27 // pred_check_branch
        %278 = sbr.rel (%p275) target = $region32
      $region31: #{dice_loss.1} parent=27 // pred_region
        %279 = vst [vmem:[%s268] sm:$0xf] 0.0
        %280 = vst [vmem:[%s272] sm:$0xf] 0.0
      $region32: #{dice_loss.1} parent=27 // pred_fallthru
        _
      %v281 = vld [vmem:[%s250] sm:$0xff]
      %v282 = vld [vmem:[%s250 + $0x8] sm:$0xff]
      %v283 = vld [vmem:[%s250 + $0x10] sm:$0xff]
      %v284 = vld [vmem:[%s250 + $0x18] sm:$0xff]
      %v285 = vld [vmem:[%s250 + $0x20] sm:$0xff]
      %v286 = vld [vmem:[%s250 + $0x28] sm:$0xff]
      %v287 = vld [vmem:[%s250 + $0x30] sm:$0xff]
      %v288 = vld [vmem:[%s250 + $0x38] sm:$0xff]
      %v289 = vmax.f32 %v281, %v285
      %v290 = vmax.f32 %v283, %v287
      %v291 = vmax.f32 %v289, %v290
      %v292 = vmax.f32 %v282, %v286
      %v293 = vmax.f32 %v284, %v288
      %v294 = vmax.f32 %v292, %v293
      %v295 = vsub.f32 %v281, %v291
      %v296 = vsub.f32 %v282, %v294
      %v297 = vsub.f32 %v283, %v291
      %v298 = vsub.f32 %v284, %v294
      %v299 = vsub.f32 %v285, %v291
      %v300 = vsub.f32 %v286, %v294
      %v301 = vsub.f32 %v287, %v291
      %v302 = vsub.f32 %v288, %v294
      %v303 = vmul.f32 %v295, 1.442695
      %v304 = vpow.pop %v303
      %v305 = vmul.f32 %v296, 1.442695
      %v306 = vpow.pop %v305
      %v307 = vmul.f32 %v297, 1.442695
      %v308 = vpow.pop %v307
      %v309 = vmul.f32 %v298, 1.442695
      %v310 = vpow.pop %v309
      %v311 = vmul.f32 %v299, 1.442695
      %v312 = vpow.pop %v311
      %v313 = vmul.f32 %v300, 1.442695
      %v314 = vpow.pop %v313
      %v315 = vmul.f32 %v301, 1.442695
      %v316 = vpow.pop %v315
      %v317 = vmul.f32 %v302, 1.442695
      %v318 = vpow.pop %v317
      %v319 = vadd.f32 %v304, %v308
      %v320 = vadd.f32 %v319, %v312
      %v321 = vadd.f32 %v320, %v316
      %v322 = vadd.f32 %v306, %v310
      %v323 = vadd.f32 %v322, %v314
      %v324 = vadd.f32 %v323, %v318
      %v325 = vrcp.pop %v321
      %v326 = vrcp.pop %v324
      %v327 = vmul.f32 %v304, %v325
      %v328 = vmul.f32 %v306, %v326
      %v329 = vmul.f32 %v308, %v325
      %v330 = vmul.f32 %v310, %v326
      %v331 = vmul.f32 %v312, %v325
      %v332 = vmul.f32 %v314, %v326
      %v333 = vmul.f32 %v316, %v325
      %v334 = vmul.f32 %v318, %v326
      %v335 = vld [vmem:[%s263] sm:$0x3]
      %v336 = vld [vmem:[%s263 + $0x2] sm:$0x3]
      %v337 = vunpack.c.0.s8 %v335
      %v338 = vunpack.c.0.s8 %v336
      %vm339 = vcmp.eq.s32.totalorder %v337, 0
      %vm340 = vcmp.eq.s32.totalorder %v338, 0
      %vm341 = vcmp.eq.s32.totalorder %v337, 1
      %vm342 = vcmp.eq.s32.totalorder %v338, 1
      %vm343 = vcmp.eq.s32.totalorder %v337, 2
      %vm344 = vcmp.eq.s32.totalorder %v338, 2
      %vm345 = vcmp.eq.s32.totalorder %v337, 3
      %vm346 = vcmp.eq.s32.totalorder %v338, 3
      %v347 = vld [vmem:[%s268] sm:$0xf]
      %v348 = vsel %vm339, %v327, 0.0
      %v349 = vsel %vm340, %v328, 0.0
      %v350 = vsel %vm341, %v329, 0.0
      %v351 = vsel %vm342, %v330, 0.0
      %v352 = vsel %vm343, %v331, 0.0
      %v353 = vsel %vm344, %v332, 0.0
      %v354 = vsel %vm345, %v333, 0.0
      %v355 = vsel %vm346, %v334, 0.0
      %v356 = vadd.f32 %v348, %v349
      %v357 = vrot.slane %v356, 4
      %v358 = vadd.f32 %v356, %v357
      %v359 = vrot.slane %v358, 2
      %v360 = vadd.f32 %v358, %v359
      %v361 = vrot.slane %v360, 1
      %v362 = vadd.f32 %v360, %v361
      %v363 = vadd.f32 %v350, %v351
      %v364 = vrot.slane %v363, 4
      %v365 = vadd.f32 %v363, %v364
      %v366 = vrot.slane %v365, 2
      %v367 = vadd.f32 %v365, %v366
      %v368 = vrot.slane %v367, 1
      %v369 = vadd.f32 %v367, %v368
      %v370 = vadd.f32 %v352, %v353
      %v371 = vrot.slane %v370, 4
      %v372 = vadd.f32 %v370, %v371
      %v373 = vrot.slane %v372, 2
      %v374 = vadd.f32 %v372, %v373
      %v375 = vrot.slane %v374, 1
      %v376 = vadd.f32 %v374, %v375
      %v377 = vadd.f32 %v354, %v355
      %v378 = vrot.slane %v377, 4
      %v379 = vadd.f32 %v377, %v378
      %v380 = vrot.slane %v379, 2
      %v381 = vadd.f32 %v379, %v380
      %v382 = vrot.slane %v381, 1
      %v383 = vadd.f32 %v381, %v382
      %vm388 = vcmask 1041409
      %v389 = vsel %vm388, %v369, %v362
      %vm390 = vcmask 1042434
      %v391 = vsel %vm390, %v376, %v389
      %vm392 = vcmask 1043459
      %v393 = vsel %vm392, %v383, %v391
      %v395 = vadd.f32 %v347, %v393
      %396 = vst [vmem:[%s268] sm:$0xf] %v395
      %v397 = vadd.f32 %v327, 1.0
      %v398 = vadd.f32 %v328, 1.0
      %v399 = vadd.f32 %v329, 1.0
      %v400 = vadd.f32 %v330, 1.0
      %v401 = vadd.f32 %v331, 1.0
      %v402 = vadd.f32 %v332, 1.0
      %v403 = vadd.f32 %v333, 1.0
      %v404 = vadd.f32 %v334, 1.0
      %v405 = vsel %vm339, %v397, %v327
      %v406 = vsel %vm340, %v398, %v328
      %v407 = vsel %vm341, %v399, %v329
      %v408 = vsel %vm342, %v400, %v330
      %v409 = vsel %vm343, %v401, %v331
      %v410 = vsel %vm344, %v402, %v332
      %v411 = vsel %vm345, %v403, %v333
      %v412 = vsel %vm346, %v404, %v334
      %vm413 = vcmp.ge.s32.totalorder %v337, 0
      %vm414 = vcmp.ge.s32.totalorder %v338, 0
      %v415 = vsel %vm413, 1, 0
      %v416 = vsel %vm414, 1, 0
      %vm417 = vcmp.eq.s32.totalorder %v415, 1
      %vm418 = vcmp.eq.s32.totalorder %v416, 1
      %v419 = vsel %vm417, %v405, 0.0
      %v420 = vsel %vm418, %v406, 0.0
      %v421 = vsel %vm417, %v407, 0.0
      %v422 = vsel %vm418, %v408, 0.0
      %v423 = vsel %vm417, %v409, 0.0
      %v424 = vsel %vm418, %v410, 0.0
      %v425 = vsel %vm417, %v411, 0.0
      %v426 = vsel %vm418, %v412, 0.0
      %v427 = vld [vmem:[%s272] sm:$0xf]
      %v428 = vadd.f32 %v419, %v420
      %v429 = vrot.slane %v428, 4
      %v430 = vadd.f32 %v428, %v429
      %v431 = vrot.slane %v430, 2
      %v432 = vadd.f32 %v430, %v431
      %v433 = vrot.slane %v432, 1
      %v434 = vadd.f32 %v432, %v433
      %v435 = vadd.f32 %v421, %v422
      %v436 = vrot.slane %v435, 4
      %v437 = vadd.f32 %v435, %v436
      %v438 = vrot.slane %v437, 2
      %v439 = vadd.f32 %v437, %v438
      %v440 = vrot.slane %v439, 1
      %v441 = vadd.f32 %v439, %v440
      %v442 = vadd.f32 %v423, %v424
      %v443 = vrot.slane %v442, 4
      %v444 = vadd.f32 %v442, %v443
      %v445 = vrot.slane %v444, 2
      %v446 = vadd.f32 %v444, %v445
      %v447 = vrot.slane %v446, 1
      %v448 = vadd.f32 %v446, %v447
      %v449 = vadd.f32 %v425, %v426
      %v450 = vrot.slane %v449, 4
      %v451 = vadd.f32 %v449, %v450
      %v452 = vrot.slane %v451, 2
      %v453 = vadd.f32 %v451, %v452
      %v454 = vrot.slane %v453, 1
      %v455 = vadd.f32 %v453, %v454
      %v460 = vsel %vm388, %v441, %v434
      %v461 = vsel %vm390, %v448, %v460
      %v462 = vsel %vm392, %v455, %v461
      %v464 = vadd.f32 %v427, %v462
      %465 = vst [vmem:[%s272] sm:$0xf] %v464
      %p466 = scmp.lt.s32.totalorder %s20, 0
      %s467 = scalar_select %p466, %s20, 0
      %s468 = smul.addr %s467, 4
      %s469 = scalar_lea.vmem %s2, %s468
      %p470 = scmp.lt.s32.totalorder %s20, 0
      %s471 = scalar_select %p470, %s20, 0
      %s472 = smul.addr %s471, 4
      %s473 = scalar_lea.vmem %s3, %s472
      // Predicated region
      $region33: #{dice_loss.1} parent=27 // pred_check
        %p474 = pneg %p112
      $region34: #{dice_loss.1} parent=27 // pred_check_branch
        %476 = sbr.rel (%p474) target = $region36
      $region35: #{dice_loss.1} parent=27 // pred_region
        _
      $region36: #{dice_loss.1} parent=27 // pred_fallthru
        _
      // Predicated region
      $region37: #{dice_loss.1} parent=27 // pred_check
        %p477 = pneg %p138
      $region38: #{dice_loss.1} parent=27 // pred_check_branch
        %479 = sbr.rel (%p477) target = $region40
      $region39: #{dice_loss.1} parent=27 // pred_region
        _
      $region40: #{dice_loss.1} parent=27 // pred_fallthru
        _
      // Predicated region
      $region41: #{dice_loss.1} parent=27 // pred_check
        %p480 = pneg %p112
      $region42: #{dice_loss.1} parent=27 // pred_check_branch
        %482 = sbr.rel (%p480) target = $region44
      $region43: #{dice_loss.1} parent=27 // pred_region
        %p483 = scmp.lt.s32.totalorder %s20, 0
        %s484 = scalar_select %p483, %s20, 0
        %s485 = smul.addr %s484, 4
        %s486 = scalar_lea.vmem %s2, %s485
      $region44: #{dice_loss.1} parent=27 // pred_fallthru
        _
      // Predicated region
      $region45: #{dice_loss.1} parent=27 // pred_check
        %p487 = pneg %p138
      $region46: #{dice_loss.1} parent=27 // pred_check_branch
        %489 = sbr.rel (%p487) target = $region48
      $region47: #{dice_loss.1} parent=27 // pred_region
        %p490 = scmp.lt.s32.totalorder %s20, 0
        %s491 = scalar_select %p490, %s20, 0
        %s492 = smul.addr %s491, 4
        %s493 = scalar_lea.vmem %s3, %s492
      $region48: #{dice_loss.1} parent=27 // pred_fallthru
        _
    $region28: #{dice_loss.1} parent=5 // pred_fallthru
      _
    %p494 = scmp.le.s32.totalorder 2, %s10
    // Predicated region
    $region49: #{dice_loss.1} parent=5 // pred_check
      %p495 = pneg %p494
    $region50: #{dice_loss.1} parent=5 // pred_check_branch
      %497 = sbr.rel (%p495) target = $region52
    $region51: #{dice_loss.1} parent=5 // pred_region
      %s498 = ssub.s32 %s10, 2
    $region52: #{dice_loss.1} parent=5 // pred_fallthru
      _
  $region6: #{dice_loss.1} parent=0 // loop_footer
    %s14 = sadd.s32 1, %s10
  $region7: #{dice_loss.1} parent=0 // loop_footer_branch
    %9 = sbr.rel target = $region3
  $region8: #{dice_loss.1} parent=0 // loop_exit
    _

</llo_original>
